<compile_context>
chip_gen: v6e
topology: v6e:2x2x1
jax: 0.10.0
libtpu: 0.0.40
codegen_flags: <defaults>
</compile_context>

<pallas_src>
import math

import jax
import jax.numpy as jnp
from jax.experimental import pallas as pl
from jax.experimental.pallas import tpu as pltpu


_INV_SQRT2 = 1.0 / math.sqrt(2.0)


def _gelu_exact(x):
    # PyTorch nn.GELU() default: 0.5 * x * (1 + erf(x / sqrt(2)))
    # (kept exact for parity with the module; the tanh approximation would
    # move work to the EUP slot on v7x if erf parity were not required).
    return 0.5 * x * (1.0 + jax.lax.erf(x * _INV_SQRT2))


def _round_up(n, m):
    return ((n + m - 1) // m) * m


def _mlp_kernel(x_ref, w0_ref, b0_ref, w1_ref, b1_ref, w2_ref, b2_ref, o_ref):
    # Cast x to the bf16 MXU operand dtype in-kernel (VPU work hidden under
    # the DMA pipeline) instead of an extra wrapper cast pass over HBM.
    x = x_ref[...].astype(w0_ref.dtype)

    # Layer 0: bf16 operands on the MXU, f32 accumulate, f32 bias + GELU.
    h = jnp.dot(x, w0_ref[...], preferred_element_type=jnp.float32)
    h = _gelu_exact(h + b0_ref[...])
    # TODO(synk): dropout is identity here (eval mode); training-mode dropout
    # would need pltpu.prng_seed / pltpu.prng_random_bits masking.

    # Layer 1
    h = jnp.dot(h.astype(w1_ref.dtype), w1_ref[...],
                preferred_element_type=jnp.float32)
    h = _gelu_exact(h + b1_ref[...])

    # Output layer (un-padded D_out columns; masked store but ~64x fewer bytes
    # than a 128-lane-padded slab when D_out is tiny).
    y = jnp.dot(h.astype(w2_ref.dtype), w2_ref[...],
                preferred_element_type=jnp.float32)
    o_ref[...] = (y + b2_ref[...]).astype(o_ref.dtype)


def prepare_params(params, compute_dtype=jnp.bfloat16):
    """One-time padding + casting of ClassifierMLP weights.

    * Hidden widths H0/H1 are zero-padded up to multiples of 128 lanes.
      Exact: padded biases are 0 and GELU(0)=0, so padded hidden activations
      are exactly zero and the zero-padded rows of the following weight
      contribute nothing.
    * Weights are cast to the bf16 MXU operand dtype; biases stay f32 for the
      f32 accumulate / bias / GELU path.
    Call once per model and reuse for every forward call so the per-call
    wrapper emits no convert/pad HBM traffic.
    """
    w0, b0 = params["w0"], params["b0"]   # (D_in, H0), (1, H0)
    w1, b1 = params["w1"], params["b1"]   # (H0, H1),   (1, H1)
    w2, b2 = params["w2"], params["b2"]   # (H1, D_out),(1, D_out)

    h0 = w0.shape[1]
    h1 = w1.shape[1]
    h0p = _round_up(h0, 128)
    h1p = _round_up(h1, 128)

    if h0p != h0:
        w0 = jnp.pad(w0, ((0, 0), (0, h0p - h0)))
        b0 = jnp.pad(b0, ((0, 0), (0, h0p - h0)))
        w1 = jnp.pad(w1, ((0, h0p - h0), (0, 0)))
    if h1p != h1:
        w1 = jnp.pad(w1, ((0, 0), (0, h1p - h1)))
        b1 = jnp.pad(b1, ((0, 0), (0, h1p - h1)))
        w2 = jnp.pad(w2, ((0, h1p - h1), (0, 0)))

    return {
        "w0": w0.astype(compute_dtype), "b0": b0.astype(jnp.float32),
        "w1": w1.astype(compute_dtype), "b1": b1.astype(jnp.float32),
        "w2": w2.astype(compute_dtype), "b2": b2.astype(jnp.float32),
    }


def classifier_mlp_forward(x, prepared, *, block_b=None):
    """x: (B, input_size) f32/bf16.  prepared: output of prepare_params()."""
    B, D_in = x.shape
    w0, b0 = prepared["w0"], prepared["b0"]
    w1, b1 = prepared["w1"], prepared["b1"]
    w2, b2 = prepared["w2"], prepared["b2"]
    D_out = w2.shape[1]

    # Batch blocking: one large block (up to 512 rows) amortizes the ~0.35us
    # per-grid-step overhead on single-TC v5e/v6e; larger batches split
    # naturally into >=512-row shards so both v7x TensorCores get MXU-filling
    # work via the "parallel" grid axis.  Multiple of 16 rows for bf16
    # sublane packing; user-supplied values are rounded too.
    if block_b is None:
        block_b = min(512, _round_up(B, 16))
    else:
        block_b = min(_round_up(max(block_b, 16), 16), _round_up(B, 16))
    grid = (pl.cdiv(B, block_b),)
    # Note: a partial last block (B % block_b != 0) relies on Pallas' masked
    # edge handling; garbage rows flow through erf harmlessly and are never
    # stored (exercised in the __main__ test below).

    full = lambda i: (0, 0)   # weights/biases resident: constant block index

    # VMEM budget from the actual buffer footprints (x/out double-buffered by
    # the pipeline, weights resident double-buffered once), clamped to v7x's
    # 64 MiB physical VMEM.
    itemsize = jnp.dtype(x.dtype).itemsize
    x_bytes = block_b * D_in * itemsize
    out_bytes = block_b * D_out * itemsize
    w_bytes = sum(int(a.size) * jnp.dtype(a.dtype).itemsize
                  for a in (w0, b0, w1, b1, w2, b2))
    vmem_bytes = 4 * (x_bytes + out_bytes) + 2 * w_bytes + (8 << 20)
    vmem_bytes = int(max(16 << 20, min(vmem_bytes, 64 << 20)))

    out = pl.pallas_call(
        _mlp_kernel,
        out_shape=jax.ShapeDtypeStruct((B, D_out), x.dtype),
        grid=grid,
        in_specs=[
            pl.BlockSpec((block_b, D_in), lambda i: (i, 0)),
            pl.BlockSpec(w0.shape, full),
            pl.BlockSpec(b0.shape, full),
            pl.BlockSpec(w1.shape, full),
            pl.BlockSpec(b1.shape, full),
            pl.BlockSpec(w2.shape, full),
            pl.BlockSpec(b2.shape, full),
        ],
        out_specs=pl.BlockSpec((block_b, D_out), lambda i: (i, 0)),
        compiler_params=pltpu.CompilerParams(
            dimension_semantics=("parallel",),
            vmem_limit_bytes=vmem_bytes,
        ),
    )(x, w0, b0, w1, b1, w2, b2)

    return out


def init_params(key, input_size, hidden_sizes, output_size, dtype=jnp.float32):
    """Xavier-uniform weights, zero biases (matches ClassifierMLP.init_weight).

    Weights are stored already transposed to (in, out)."""
    sizes = [input_size] + list(hidden_sizes) + [output_size]
    params = {}
    keys = jax.random.split(key, len(sizes) - 1)
    for i, (fan_in, fan_out) in enumerate(zip(sizes[:-1], sizes[1:])):
        bound = math.sqrt(6.0 / (fan_in + fan_out))
        w = jax.random.uniform(keys[i], (fan_in, fan_out), dtype=dtype,
                               minval=-bound, maxval=bound)
        b = jnp.zeros((1, fan_out), dtype=dtype)
        params[f"w{i}"] = w
        params[f"b{i}"] = b
    return params


def _reference_forward(x, params, compute_dtype=jnp.float32):
    """Pure-JAX reference (optionally with bf16 matmul operands, f32 accum)."""
    def dense(h, w, b):
        return (jnp.dot(h.astype(compute_dtype), w.astype(compute_dtype),
                        preferred_element_type=jnp.float32)
                + b.astype(jnp.float32))
    h = _gelu_exact(dense(x, params["w0"], params["b0"]))
    h = _gelu_exact(dense(h, params["w1"], params["b1"]))
    return dense(h, params["w2"], params["b2"])


if __name__ == "__main__":
    key = jax.random.PRNGKey(0)
    k_x, k_p, k_x2 = jax.random.split(key, 3)

    # Small shapes consistent with the module defaults (scaled down).
    batch = 32
    input_size = 128
    hidden_sizes = [64, 64]     # exercises the 64 -> 128 lane padding
    output_size = 2

    x = jax.random.normal(k_x, (batch, input_size), dtype=jnp.float32)
    params = init_params(k_p, input_size, hidden_sizes, output_size)
    prepared = prepare_params(params)          # one-time pad + cast

    out = jax.block_until_ready(classifier_mlp_forward(x, prepared))
    assert out.shape == (batch, output_size)

    # Precision-matched reference (bf16 operands, f32 accumulate) -> tight tol.
    # Reference uses the UN-padded params, so this also verifies the hidden
    # padding is numerically exact.
    ref_bf16 = _reference_forward(x, params, compute_dtype=jnp.bfloat16)
    assert jnp.allclose(out, ref_bf16, atol=2e-3, rtol=2e-3), \
        "mismatch vs bf16-matched reference"

    # Full-f32 reference -> loose tol covering bf16 operand rounding.
    ref_f32 = _reference_forward(x, params, compute_dtype=jnp.float32)
    assert jnp.allclose(out, ref_f32, atol=1.5e-1, rtol=1.5e-1), \
        "mismatch vs f32 reference"

    # Partial last block (B not a multiple of block_b) + user block_b rounding.
    x2 = jax.random.normal(k_x2, (40, input_size), dtype=jnp.float32)
    out2 = jax.block_until_ready(
        classifier_mlp_forward(x2, prepared, block_b=16))
    assert out2.shape == (40, output_size)
    ref2 = _reference_forward(x2, params, compute_dtype=jnp.bfloat16)
    assert jnp.allclose(out2, ref2, atol=2e-3, rtol=2e-3), \
        "mismatch on partial last block"

    print("KERNEL_OK")
</pallas_src>

<mosaic_0001>
module attributes {stable_mosaic.version = 11 : i64} {
  func.func @_mlp_kernel(%arg0: i32, %arg1: memref<32x128xf32, #tpu.memory_space<vmem>>, %arg2: memref<128x128xbf16, #tpu.memory_space<vmem>>, %arg3: memref<1x128xf32, #tpu.memory_space<vmem>>, %arg4: memref<128x128xbf16, #tpu.memory_space<vmem>>, %arg5: memref<1x128xf32, #tpu.memory_space<vmem>>, %arg6: memref<128x2xbf16, #tpu.memory_space<vmem>>, %arg7: memref<1x2xf32, #tpu.memory_space<vmem>>, %arg8: memref<32x2xf32, #tpu.memory_space<vmem>>) attributes {dimension_semantics = [#tpu.dimension_semantics<parallel>], iteration_bounds = array<i64: 1>, scalar_prefetch = 0 : i64, scratch_operands = 0 : i64, tpu.core_type = #tpu.core_type<tc>, window_params = [{transform_indices = @transform_0, window_bounds = array<i64: 32, 128>}, {pipeline_mode = #tpu.pipeline_mode<synchronous>, transform_indices = @transform_1, window_bounds = array<i64: 128, 128>}, {pipeline_mode = #tpu.pipeline_mode<synchronous>, transform_indices = @transform_2, window_bounds = array<i64: 1, 128>}, {pipeline_mode = #tpu.pipeline_mode<synchronous>, transform_indices = @transform_3, window_bounds = array<i64: 128, 128>}, {pipeline_mode = #tpu.pipeline_mode<synchronous>, transform_indices = @transform_4, window_bounds = array<i64: 1, 128>}, {pipeline_mode = #tpu.pipeline_mode<synchronous>, transform_indices = @transform_5, window_bounds = array<i64: 128, 2>}, {pipeline_mode = #tpu.pipeline_mode<synchronous>, transform_indices = @transform_6, window_bounds = array<i64: 1, 2>}, {transform_indices = @transform_7, window_bounds = array<i64: 32, 2>}]} {
    %c0 = arith.constant 0 : index
    %c0_0 = arith.constant 0 : index
    %0 = vector.load %arg1[%c0, %c0_0] : memref<32x128xf32, #tpu.memory_space<vmem>>, vector<32x128xf32>
    %1 = arith.truncf %0 : vector<32x128xf32> to vector<32x128xbf16>
    %c0_1 = arith.constant 0 : index
    %c0_2 = arith.constant 0 : index
    %2 = vector.load %arg2[%c0_1, %c0_2] : memref<128x128xbf16, #tpu.memory_space<vmem>>, vector<128x128xbf16>
    %cst = arith.constant dense<0.000000e+00> : vector<32x128xf32>
    %3 = tpu.matmul %1, %2, %cst {dimension_numbers = #tpu.dot_dimension_numbers<[1], [0], [0], [1], [0, 0, 1, 1], [], []>} : vector<32x128xbf16>, vector<128x128xbf16>, vector<32x128xf32> -> vector<32x128xf32>
    %c0_3 = arith.constant 0 : index
    %c0_4 = arith.constant 0 : index
    %4 = vector.load %arg3[%c0_3, %c0_4] : memref<1x128xf32, #tpu.memory_space<vmem>>, vector<1x128xf32>
    %5 = vector.broadcast %4 : vector<1x128xf32> to vector<32x128xf32>
    %6 = arith.addf %3, %5 : vector<32x128xf32>
    %cst_5 = arith.constant 5.000000e-01 : f32
    %7 = vector.broadcast %cst_5 : f32 to vector<32x128xf32>
    %8 = arith.mulf %7, %6 : vector<32x128xf32>
    %cst_6 = arith.constant 0.707106769 : f32
    %9 = vector.broadcast %cst_6 : f32 to vector<32x128xf32>
    %10 = arith.mulf %6, %9 : vector<32x128xf32>
    %11 = math.erf %10 : vector<32x128xf32>
    %cst_7 = arith.constant 1.000000e+00 : f32
    %12 = vector.broadcast %cst_7 : f32 to vector<32x128xf32>
    %13 = arith.addf %12, %11 : vector<32x128xf32>
    %14 = arith.mulf %8, %13 : vector<32x128xf32>
    %15 = arith.truncf %14 : vector<32x128xf32> to vector<32x128xbf16>
    %c0_8 = arith.constant 0 : index
    %c0_9 = arith.constant 0 : index
    %16 = vector.load %arg4[%c0_8, %c0_9] : memref<128x128xbf16, #tpu.memory_space<vmem>>, vector<128x128xbf16>
    %cst_10 = arith.constant dense<0.000000e+00> : vector<32x128xf32>
    %17 = tpu.matmul %15, %16, %cst_10 {dimension_numbers = #tpu.dot_dimension_numbers<[1], [0], [0], [1], [0, 0, 1, 1], [], []>} : vector<32x128xbf16>, vector<128x128xbf16>, vector<32x128xf32> -> vector<32x128xf32>
    %c0_11 = arith.constant 0 : index
    %c0_12 = arith.constant 0 : index
    %18 = vector.load %arg5[%c0_11, %c0_12] : memref<1x128xf32, #tpu.memory_space<vmem>>, vector<1x128xf32>
    %19 = vector.broadcast %18 : vector<1x128xf32> to vector<32x128xf32>
    %20 = arith.addf %17, %19 : vector<32x128xf32>
    %cst_13 = arith.constant 5.000000e-01 : f32
    %21 = vector.broadcast %cst_13 : f32 to vector<32x128xf32>
    %22 = arith.mulf %21, %20 : vector<32x128xf32>
    %cst_14 = arith.constant 0.707106769 : f32
    %23 = vector.broadcast %cst_14 : f32 to vector<32x128xf32>
    %24 = arith.mulf %20, %23 : vector<32x128xf32>
    %25 = math.erf %24 : vector<32x128xf32>
    %cst_15 = arith.constant 1.000000e+00 : f32
    %26 = vector.broadcast %cst_15 : f32 to vector<32x128xf32>
    %27 = arith.addf %26, %25 : vector<32x128xf32>
    %28 = arith.mulf %22, %27 : vector<32x128xf32>
    %29 = arith.truncf %28 : vector<32x128xf32> to vector<32x128xbf16>
    %c0_16 = arith.constant 0 : index
    %c0_17 = arith.constant 0 : index
    %30 = vector.load %arg6[%c0_16, %c0_17] : memref<128x2xbf16, #tpu.memory_space<vmem>>, vector<128x2xbf16>
    %cst_18 = arith.constant dense<0.000000e+00> : vector<32x2xf32>
    %31 = tpu.matmul %29, %30, %cst_18 {dimension_numbers = #tpu.dot_dimension_numbers<[1], [0], [0], [1], [0, 0, 1, 1], [], []>} : vector<32x128xbf16>, vector<128x2xbf16>, vector<32x2xf32> -> vector<32x2xf32>
    %c0_19 = arith.constant 0 : index
    %c0_20 = arith.constant 0 : index
    %32 = vector.load %arg7[%c0_19, %c0_20] : memref<1x2xf32, #tpu.memory_space<vmem>>, vector<1x2xf32>
    %33 = vector.broadcast %32 : vector<1x2xf32> to vector<32x2xf32>
    %34 = arith.addf %31, %33 : vector<32x2xf32>
    %c0_21 = arith.constant 0 : index
    %c0_22 = arith.constant 0 : index
    %35 = vector.load %arg8[%c0_21, %c0_22] : memref<32x2xf32, #tpu.memory_space<vmem>>, vector<32x2xf32>
    tpu.vector_store %arg8[%c0_21, %c0_22], %34 {strides = array<i32>} : memref<32x2xf32, #tpu.memory_space<vmem>>, vector<32x2xf32>,
    return
  }
  func.func @transform_0(%arg0: i32) -> (i32, i32) {
    %c0_i32 = arith.constant 0 : i32
    %c0_i32_0 = arith.constant 0 : i32
    return %arg0, %c0_i32 : i32, i32
  }
  func.func @transform_1(%arg0: i32) -> (i32, i32) {
    %c0_i32 = arith.constant 0 : i32
    %c0_i32_0 = arith.constant 0 : i32
    %c0_i32_1 = arith.constant 0 : i32
    return %c0_i32, %c0_i32_0 : i32, i32
  }
  func.func @transform_2(%arg0: i32) -> (i32, i32) {
    %c0_i32 = arith.constant 0 : i32
    %c0_i32_0 = arith.constant 0 : i32
    %c0_i32_1 = arith.constant 0 : i32
    return %c0_i32, %c0_i32_0 : i32, i32
  }
  func.func @transform_3(%arg0: i32) -> (i32, i32) {
    %c0_i32 = arith.constant 0 : i32
    %c0_i32_0 = arith.constant 0 : i32
    %c0_i32_1 = arith.constant 0 : i32
    return %c0_i32, %c0_i32_0 : i32, i32
  }
  func.func @transform_4(%arg0: i32) -> (i32, i32) {
    %c0_i32 = arith.constant 0 : i32
    %c0_i32_0 = arith.constant 0 : i32
    %c0_i32_1 = arith.constant 0 : i32
    return %c0_i32, %c0_i32_0 : i32, i32
  }
  func.func @transform_5(%arg0: i32) -> (i32, i32) {
    %c0_i32 = arith.constant 0 : i32
    %c0_i32_0 = arith.constant 0 : i32
    %c0_i32_1 = arith.constant 0 : i32
    return %c0_i32, %c0_i32_0 : i32, i32
  }
  func.func @transform_6(%arg0: i32) -> (i32, i32) {
    %c0_i32 = arith.constant 0 : i32
    %c0_i32_0 = arith.constant 0 : i32
    %c0_i32_1 = arith.constant 0 : i32
    return %c0_i32, %c0_i32_0 : i32, i32
  }
  func.func @transform_7(%arg0: i32) -> (i32, i32) {
    %c0_i32 = arith.constant 0 : i32
    %c0_i32_0 = arith.constant 0 : i32
    return %arg0, %c0_i32 : i32, i32
  }
}

</mosaic_0001>

<llo_original>
// kernel: tpu_custom_call.1
$region0: #{tpu_custom_call.1}
  #allocation0 [shape = 'u32[]', space=smem, size = 0x4, offset = 0x4, fixed_abs, tag = 'smem constant byte address 0x4 - core index']
  #allocation1 [shape = 'u32[144,128]{1,0:T(1,128)}', space=vmem, size = 0x12000, scoped, tag = 'internal scratch']
  %s0 = inlined_call_operand.hbm [shape: f32[32,128], index: 0, kind: input, shape index: {}]
  %s1 = inlined_call_operand.vmem [shape: bf16[128,128], index: 1, kind: input, shape index: {}]
  %s2 = inlined_call_operand.vmem [shape: f32[1,128], index: 2, kind: input, shape index: {}]
  %s3 = inlined_call_operand.hbm [shape: bf16[128,128], index: 3, kind: input, shape index: {}]
  %s4 = inlined_call_operand.vmem [shape: f32[1,128], index: 4, kind: input, shape index: {}]
  %s5 = inlined_call_operand.vmem [shape: bf16[128,2], index: 5, kind: input, shape index: {}]
  %s6 = inlined_call_operand.vmem [shape: f32[1,2], index: 6, kind: input, shape index: {}]
  %s7 = inlined_call_operand.vmem [shape: f32[32,2], index: 7, kind: output, shape index: {}]
  %s8 = sld [smem:[#allocation0]]
  $region46: #{tpu_custom_call.1} parent=0
    _
  %s10 = ssub.s32 1, %s8
  %s11 = scalar_select 0, %s10, %s8
  $region1: #{tpu_custom_call.1} parent=0
    #allocation2 [shape = 'u8[16384]{0}', space=vmem, size = 0x4000, scoped, tag = 'input window, operand 0, single buffered']
    #allocation3 [shape = 's32[1]{0}', space=sflag, size = 0x4, scoped, tag = 'scoped memory for tpu_custom_call.1']
    #allocation4 [shape = 'u8[32768]{0}', space=vmem, size = 0x8000, scoped, tag = 'input window, operand 3, single buffered']
    #allocation5 [shape = 's32[1]{0}', space=sflag, size = 0x4, scoped, tag = 'scoped memory for tpu_custom_call.1']
    %12 = vsyncpa [#allocation3], 0
    %13 = vsyncpa [#allocation5], 0
    // Predicated region
    $region2: #{tpu_custom_call.1} parent=1 // pred_check
      _
    $region3: #{tpu_custom_call.1} parent=1 // pred_check_branch
      %15 = sbr.rel (0) target = $region5
    $region4: #{tpu_custom_call.1} parent=1 // pred_region
      %s17 = ssub.s32 512, 512
      %18 = vsyncadd [#allocation3], %s17
      %s19 = sshll.u32 [#allocation2], 4
      %s20 = int_to_ptr.vmem [resolvable:$true] %s19
      %25 = dma.hbm_to_vmem [thread:$0]  %s0, 512, %s20, [#allocation3], 128, 128, 8
    $region5: #{tpu_custom_call.1} parent=1 // pred_fallthru
      _
    // Predicated region
    $region6: #{tpu_custom_call.1} parent=1 // pred_check
      _
    $region7: #{tpu_custom_call.1} parent=1 // pred_check_branch
      %27 = sbr.rel (0) target = $region9
    $region8: #{tpu_custom_call.1} parent=1 // pred_region
      _
    $region9: #{tpu_custom_call.1} parent=1 // pred_fallthru
      _
    // Predicated region
    $region10: #{tpu_custom_call.1} parent=1 // pred_check
      _
    $region11: #{tpu_custom_call.1} parent=1 // pred_check_branch
      %29 = sbr.rel (0) target = $region13
    $region12: #{tpu_custom_call.1} parent=1 // pred_region
      _
    $region13: #{tpu_custom_call.1} parent=1 // pred_fallthru
      _
    // Predicated region
    $region14: #{tpu_custom_call.1} parent=1 // pred_check
      _
    $region15: #{tpu_custom_call.1} parent=1 // pred_check_branch
      %31 = sbr.rel (0) target = $region17
    $region16: #{tpu_custom_call.1} parent=1 // pred_region
      %s33 = ssub.s32 1024, 1024
      %34 = vsyncadd [#allocation5], %s33
      %s35 = sshll.u32 [#allocation4], 4
      %s36 = int_to_ptr.vmem [resolvable:$true] %s35
      %41 = dma.hbm_to_vmem [thread:$0]  %s3, 1024, %s36, [#allocation5], 64, 64, 4
    $region17: #{tpu_custom_call.1} parent=1 // pred_fallthru
      _
    // Predicated region
    $region18: #{tpu_custom_call.1} parent=1 // pred_check
      _
    $region19: #{tpu_custom_call.1} parent=1 // pred_check_branch
      %43 = sbr.rel (0) target = $region21
    $region20: #{tpu_custom_call.1} parent=1 // pred_region
      _
    $region21: #{tpu_custom_call.1} parent=1 // pred_fallthru
      _
    // Predicated region
    $region22: #{tpu_custom_call.1} parent=1 // pred_check
      _
    $region23: #{tpu_custom_call.1} parent=1 // pred_check_branch
      %45 = sbr.rel (0) target = $region25
    $region24: #{tpu_custom_call.1} parent=1 // pred_region
      _
    $region25: #{tpu_custom_call.1} parent=1 // pred_fallthru
      _
    // Predicated region
    $region26: #{tpu_custom_call.1} parent=1 // pred_check
      _
    $region27: #{tpu_custom_call.1} parent=1 // pred_check_branch
      %47 = sbr.rel (0) target = $region29
    $region28: #{tpu_custom_call.1} parent=1 // pred_region
      _
    $region29: #{tpu_custom_call.1} parent=1 // pred_fallthru
      _
    // Predicated region
    $region30: #{tpu_custom_call.1} parent=1 // pred_check
      _
    $region31: #{tpu_custom_call.1} parent=1 // pred_check_branch
      %49 = sbr.rel (0) target = $region33
    $region32: #{tpu_custom_call.1} parent=1 // pred_region
      %50 = dma.done [#allocation3], 512
    $region33: #{tpu_custom_call.1} parent=1 // pred_fallthru
      _
    // Predicated region
    $region34: #{tpu_custom_call.1} parent=1 // pred_check
      _
    $region35: #{tpu_custom_call.1} parent=1 // pred_check_branch
      %52 = sbr.rel (0) target = $region37
    $region36: #{tpu_custom_call.1} parent=1 // pred_region
      %53 = dma.done [#allocation5], 1024
    $region37: #{tpu_custom_call.1} parent=1 // pred_fallthru
      _
    %v55 = vld [vmem:[#allocation2] sm:$0xff]
    %v56 = vld [vmem:[#allocation2 + $0x8] sm:$0xff]
    %v57 = vld [vmem:[#allocation2 + $0x10] sm:$0xff]
    %v58 = vld [vmem:[#allocation2 + $0x18] sm:$0xff]
    %v59 = vpack.c.bf16 %v56, %v55
    %v60 = vpack.c.bf16 %v58, %v57
    %v61 = vld [vmem:[%s1] sm:$0xf]
    %v62 = vld [vmem:[%s1 + $0x4] sm:$0xf]
    %v63 = vld [vmem:[%s1 + $0x8] sm:$0xf]
    %v64 = vld [vmem:[%s1 + $0xc] sm:$0xf]
    %v65 = vld [vmem:[%s1 + $0x10] sm:$0xf]
    %v66 = vld [vmem:[%s1 + $0x14] sm:$0xf]
    %v67 = vld [vmem:[%s1 + $0x18] sm:$0xf]
    %v68 = vld [vmem:[%s1 + $0x1c] sm:$0xf]
    %v69 = vld [vmem:[%s1 + $0x20] sm:$0xf]
    %v70 = vld [vmem:[%s1 + $0x24] sm:$0xf]
    %v71 = vld [vmem:[%s1 + $0x28] sm:$0xf]
    %v72 = vld [vmem:[%s1 + $0x2c] sm:$0xf]
    %v73 = vld [vmem:[%s1 + $0x30] sm:$0xf]
    %v74 = vld [vmem:[%s1 + $0x34] sm:$0xf]
    %v75 = vld [vmem:[%s1 + $0x38] sm:$0xf]
    %v76 = vld [vmem:[%s1 + $0x3c] sm:$0xf]
    %v77 = vld [vmem:[%s2] sm:$0x1]
    %v79 = vlaneseq
    %v80 = vshrl.u32 %v79, 7
    %v81 = vsub.s32 0, %v80
    %v82 = vrot.slane %v77, %v81
    %v100 = vunpack.c.l.b16 %v61
    %v101 = vunpack.c.l.b16 %v62
    %v102 = vunpack.c.l.b16 %v63
    %v103 = vunpack.c.l.b16 %v64
    %v104 = vunpack.c.l.b16 %v65
    %v105 = vunpack.c.l.b16 %v66
    %v106 = vunpack.c.l.b16 %v67
    %v107 = vunpack.c.l.b16 %v68
    %v108 = vunpack.c.l.b16 %v69
    %v109 = vunpack.c.l.b16 %v70
    %v110 = vunpack.c.l.b16 %v71
    %v111 = vunpack.c.l.b16 %v72
    %v112 = vunpack.c.l.b16 %v73
    %v113 = vunpack.c.l.b16 %v74
    %v114 = vunpack.c.l.b16 %v75
    %v115 = vunpack.c.l.b16 %v76
    %v116 = vpack.c.b16 %v101, %v100
    %v117 = vpack.c.b16 %v103, %v102
    %v118 = vpack.c.b16 %v105, %v104
    %v119 = vpack.c.b16 %v107, %v106
    %v120 = vpack.c.b16 %v109, %v108
    %v121 = vpack.c.b16 %v111, %v110
    %v122 = vpack.c.b16 %v113, %v112
    %v123 = vpack.c.b16 %v115, %v114
    %132 = vmatprep.subr.bf16.mxu0 0
    %133 = vmatpush1.bf16.msra.mxu0 %v123
    %134 = vmatprep.subr.bf16.mxu0 0
    %135 = vmatpush1.bf16.msra.mxu0 %v122
    %136 = vmatprep.subr.bf16.mxu0 0
    %137 = vmatpush1.bf16.msra.mxu0 %v121
    %138 = vmatprep.subr.bf16.mxu0 0
    %139 = vmatpush1.bf16.msra.mxu0 %v120
    %140 = vmatprep.subr.bf16.mxu0 0
    %141 = vmatpush1.bf16.msra.mxu0 %v119
    %142 = vmatprep.subr.bf16.mxu0 0
    %143 = vmatpush1.bf16.msra.mxu0 %v118
    %144 = vmatprep.subr.bf16.mxu0 0
    %145 = vmatpush1.bf16.msra.mxu0 %v117
    %146 = vmatprep.subr.bf16.mxu0 0
    %147 = vmatpush1.bf16.msra.mxu0 %v116
    %148 = vmatprep.subr.bf16.mxu0 0
    %149 = vmatpush2.bf16.msra.mxu0 0
    %150 = vmatprep.subr.bf16.mxu0 0
    %151 = vmatpush2.bf16.msra.mxu0 0
    %152 = vmatprep.subr.bf16.mxu0 0
    %153 = vmatpush2.bf16.msra.mxu0 0
    %154 = vmatprep.subr.bf16.mxu0 0
    %155 = vmatpush2.bf16.msra.mxu0 0
    %156 = vmatprep.subr.bf16.mxu0 0
    %157 = vmatpush2.bf16.msra.mxu0 0
    %158 = vmatprep.subr.bf16.mxu0 0
    %159 = vmatpush2.bf16.msra.mxu0 0
    %160 = vmatprep.subr.bf16.mxu0 0
    %161 = vmatpush2.bf16.msra.mxu0 0
    %162 = vmatprep.subr.bf16.mxu0 0
    %163 = vmatpush2.bf16.msra.mxu0 0
    %164 = vmatprep.mubr.bf16.mxu0 0
    %165 = vmatmul.mubr.bf16.gmra.mxu0 %v59
    %v166 = vpop.f32.mrf.mxu0
    %v167 = vadd.f32 %v82, %v166
    %v168 = vpop.f32.mrf.mxu0
    %v169 = vpop.f32.mrf.mxu0
    %v170 = vadd.f32 %v82, %v169
    %v171 = vpop.f32.mrf.mxu0
    %172 = vmatprep.mubr.bf16.mxu0 0
    %173 = vmatmul.mubr.bf16.gmra.mxu0 %v60
    %v174 = vpop.f32.mrf.mxu0
    %v175 = vadd.f32 %v82, %v174
    %v176 = vpop.f32.mrf.mxu0
    %v177 = vpop.f32.mrf.mxu0
    %v178 = vadd.f32 %v82, %v177
    %v179 = vpop.f32.mrf.mxu0
    %180 = vdwg.mxu0
    %v181 = vmul.f32 %v167, 0.5
    %v182 = vmul.f32 %v170, 0.5
    %v183 = vmul.f32 %v175, 0.5
    %v184 = vmul.f32 %v178, 0.5
    %v185 = vmul.f32 %v167, 0.70710677
    %v186 = vmul.f32 %v170, 0.70710677
    %v187 = vmul.f32 %v175, 0.70710677
    %v188 = vmul.f32 %v178, 0.70710677
    %v189 = verf.f32.pop %v185
    %v190 = verf.f32.pop %v186
    %v191 = verf.f32.pop %v187
    %v192 = verf.f32.pop %v188
    %v193 = vadd.f32 %v189, 1.0
    %v194 = vadd.f32 %v190, 1.0
    %v195 = vadd.f32 %v191, 1.0
    %v196 = vadd.f32 %v192, 1.0
    %v197 = vmul.f32 %v181, %v193
    %v198 = vmul.f32 %v182, %v194
    %v199 = vmul.f32 %v183, %v195
    %v200 = vmul.f32 %v184, %v196
    %v201 = vpack.c.bf16 %v198, %v197
    %v202 = vpack.c.bf16 %v200, %v199
    %v203 = vld [vmem:[#allocation4] sm:$0xf]
    %v204 = vld [vmem:[#allocation4 + $0x4] sm:$0xf]
    %v205 = vld [vmem:[#allocation4 + $0x8] sm:$0xf]
    %v206 = vld [vmem:[#allocation4 + $0xc] sm:$0xf]
    %v207 = vld [vmem:[#allocation4 + $0x10] sm:$0xf]
    %v208 = vld [vmem:[#allocation4 + $0x14] sm:$0xf]
    %v209 = vld [vmem:[#allocation4 + $0x18] sm:$0xf]
    %v210 = vld [vmem:[#allocation4 + $0x1c] sm:$0xf]
    %v211 = vld [vmem:[#allocation4 + $0x20] sm:$0xf]
    %v212 = vld [vmem:[#allocation4 + $0x24] sm:$0xf]
    %v213 = vld [vmem:[#allocation4 + $0x28] sm:$0xf]
    %v214 = vld [vmem:[#allocation4 + $0x2c] sm:$0xf]
    %v215 = vld [vmem:[#allocation4 + $0x30] sm:$0xf]
    %v216 = vld [vmem:[#allocation4 + $0x34] sm:$0xf]
    %v217 = vld [vmem:[#allocation4 + $0x38] sm:$0xf]
    %v218 = vld [vmem:[#allocation4 + $0x3c] sm:$0xf]
    %v219 = vld [vmem:[%s4] sm:$0x1]
    %v221 = vlaneseq
    %v222 = vshrl.u32 %v221, 7
    %v223 = vsub.s32 0, %v222
    %v224 = vrot.slane %v219, %v223
    %v242 = vunpack.c.l.b16 %v203
    %v243 = vunpack.c.l.b16 %v204
    %v244 = vunpack.c.l.b16 %v205
    %v245 = vunpack.c.l.b16 %v206
    %v246 = vunpack.c.l.b16 %v207
    %v247 = vunpack.c.l.b16 %v208
    %v248 = vunpack.c.l.b16 %v209
    %v249 = vunpack.c.l.b16 %v210
    %v250 = vunpack.c.l.b16 %v211
    %v251 = vunpack.c.l.b16 %v212
    %v252 = vunpack.c.l.b16 %v213
    %v253 = vunpack.c.l.b16 %v214
    %v254 = vunpack.c.l.b16 %v215
    %v255 = vunpack.c.l.b16 %v216
    %v256 = vunpack.c.l.b16 %v217
    %v257 = vunpack.c.l.b16 %v218
    %v258 = vpack.c.b16 %v243, %v242
    %v259 = vpack.c.b16 %v245, %v244
    %v260 = vpack.c.b16 %v247, %v246
    %v261 = vpack.c.b16 %v249, %v248
    %v262 = vpack.c.b16 %v251, %v250
    %v263 = vpack.c.b16 %v253, %v252
    %v264 = vpack.c.b16 %v255, %v254
    %v265 = vpack.c.b16 %v257, %v256
    %274 = vmatprep.subr.bf16.mxu0 0
    %275 = vmatpush1.bf16.msra.mxu0 %v265
    %276 = vmatprep.subr.bf16.mxu0 0
    %277 = vmatpush1.bf16.msra.mxu0 %v264
    %278 = vmatprep.subr.bf16.mxu0 0
    %279 = vmatpush1.bf16.msra.mxu0 %v263
    %280 = vmatprep.subr.bf16.mxu0 0
    %281 = vmatpush1.bf16.msra.mxu0 %v262
    %282 = vmatprep.subr.bf16.mxu0 0
    %283 = vmatpush1.bf16.msra.mxu0 %v261
    %284 = vmatprep.subr.bf16.mxu0 0
    %285 = vmatpush1.bf16.msra.mxu0 %v260
    %286 = vmatprep.subr.bf16.mxu0 0
    %287 = vmatpush1.bf16.msra.mxu0 %v259
    %288 = vmatprep.subr.bf16.mxu0 0
    %289 = vmatpush1.bf16.msra.mxu0 %v258
    %290 = vmatprep.subr.bf16.mxu0 0
    %291 = vmatpush2.bf16.msra.mxu0 0
    %292 = vmatprep.subr.bf16.mxu0 0
    %293 = vmatpush2.bf16.msra.mxu0 0
    %294 = vmatprep.subr.bf16.mxu0 0
    %295 = vmatpush2.bf16.msra.mxu0 0
    %296 = vmatprep.subr.bf16.mxu0 0
    %297 = vmatpush2.bf16.msra.mxu0 0
    %298 = vmatprep.subr.bf16.mxu0 0
    %299 = vmatpush2.bf16.msra.mxu0 0
    %300 = vmatprep.subr.bf16.mxu0 0
    %301 = vmatpush2.bf16.msra.mxu0 0
    %302 = vmatprep.subr.bf16.mxu0 0
    %303 = vmatpush2.bf16.msra.mxu0 0
    %304 = vmatprep.subr.bf16.mxu0 0
    %305 = vmatpush2.bf16.msra.mxu0 0
    %306 = vmatprep.mubr.bf16.mxu0 0
    %307 = vmatmul.mubr.bf16.gmra.mxu0 %v201
    %v308 = vpop.f32.mrf.mxu0
    %v309 = vadd.f32 %v224, %v308
    %v310 = vpop.f32.mrf.mxu0
    %v311 = vpop.f32.mrf.mxu0
    %v312 = vadd.f32 %v224, %v311
    %v313 = vpop.f32.mrf.mxu0
    %314 = vmatprep.mubr.bf16.mxu0 0
    %315 = vmatmul.mubr.bf16.gmra.mxu0 %v202
    %v316 = vpop.f32.mrf.mxu0
    %v317 = vadd.f32 %v224, %v316
    %v318 = vpop.f32.mrf.mxu0
    %v319 = vpop.f32.mrf.mxu0
    %v320 = vadd.f32 %v224, %v319
    %v321 = vpop.f32.mrf.mxu0
    %322 = vdwg.mxu0
    %v323 = vmul.f32 %v309, 0.5
    %v324 = vmul.f32 %v312, 0.5
    %v325 = vmul.f32 %v317, 0.5
    %v326 = vmul.f32 %v320, 0.5
    %v327 = vmul.f32 %v309, 0.70710677
    %v328 = vmul.f32 %v312, 0.70710677
    %v329 = vmul.f32 %v317, 0.70710677
    %v330 = vmul.f32 %v320, 0.70710677
    %v331 = verf.f32.pop %v327
    %v332 = verf.f32.pop %v328
    %v333 = verf.f32.pop %v329
    %v334 = verf.f32.pop %v330
    %v335 = vadd.f32 %v331, 1.0
    %v336 = vadd.f32 %v332, 1.0
    %v337 = vadd.f32 %v333, 1.0
    %v338 = vadd.f32 %v334, 1.0
    %v339 = vmul.f32 %v323, %v335
    %v340 = vmul.f32 %v324, %v336
    %v341 = vmul.f32 %v325, %v337
    %v342 = vmul.f32 %v326, %v338
    %v343 = vpack.c.bf16 %v340, %v339
    %v344 = vpack.c.bf16 %v342, %v341
    %v345 = vld [vmem:[%s5] sm:$0xf]
    %v346 = vld [vmem:[%s5 + $0x4] sm:$0xf]
    %v347 = vld [vmem:[%s5 + $0x8] sm:$0xf]
    %v348 = vld [vmem:[%s5 + $0xc] sm:$0xf]
    %v349 = vld [vmem:[%s5 + $0x10] sm:$0xf]
    %v350 = vld [vmem:[%s5 + $0x14] sm:$0xf]
    %v351 = vld [vmem:[%s5 + $0x18] sm:$0xf]
    %v352 = vld [vmem:[%s5 + $0x1c] sm:$0xf]
    %v353 = vld [vmem:[%s5 + $0x20] sm:$0xf]
    %v354 = vld [vmem:[%s5 + $0x24] sm:$0xf]
    %v355 = vld [vmem:[%s5 + $0x28] sm:$0xf]
    %v356 = vld [vmem:[%s5 + $0x2c] sm:$0xf]
    %v357 = vld [vmem:[%s5 + $0x30] sm:$0xf]
    %v358 = vld [vmem:[%s5 + $0x34] sm:$0xf]
    %v359 = vld [vmem:[%s5 + $0x38] sm:$0xf]
    %v360 = vld [vmem:[%s5 + $0x3c] sm:$0xf]
    %v361 = vld [vmem:[%s6] sm:$0x1]
    %v363 = vlaneseq
    %v364 = vshrl.u32 %v363, 7
    %v365 = vsub.s32 0, %v364
    %v366 = vrot.slane %v361, %v365
    %v384 = vunpack.c.l.b16 %v345
    %v385 = vunpack.c.l.b16 %v346
    %v386 = vunpack.c.l.b16 %v347
    %v387 = vunpack.c.l.b16 %v348
    %v388 = vunpack.c.l.b16 %v349
    %v389 = vunpack.c.l.b16 %v350
    %v390 = vunpack.c.l.b16 %v351
    %v391 = vunpack.c.l.b16 %v352
    %v392 = vunpack.c.l.b16 %v353
    %v393 = vunpack.c.l.b16 %v354
    %v394 = vunpack.c.l.b16 %v355
    %v395 = vunpack.c.l.b16 %v356
    %v396 = vunpack.c.l.b16 %v357
    %v397 = vunpack.c.l.b16 %v358
    %v398 = vunpack.c.l.b16 %v359
    %v399 = vunpack.c.l.b16 %v360
    %v400 = vpack.c.b16 %v385, %v384
    %v401 = vpack.c.b16 %v387, %v386
    %v402 = vpack.c.b16 %v389, %v388
    %v403 = vpack.c.b16 %v391, %v390
    %v404 = vpack.c.b16 %v393, %v392
    %v405 = vpack.c.b16 %v395, %v394
    %v406 = vpack.c.b16 %v397, %v396
    %v407 = vpack.c.b16 %v399, %v398
    %416 = vmatprep.subr.bf16.mxu0 0
    %417 = vmatpush1.bf16.msra.mxu0 %v407
    %418 = vmatprep.subr.bf16.mxu0 0
    %419 = vmatpush1.bf16.msra.mxu0 %v406
    %420 = vmatprep.subr.bf16.mxu0 0
    %421 = vmatpush1.bf16.msra.mxu0 %v405
    %422 = vmatprep.subr.bf16.mxu0 0
    %423 = vmatpush1.bf16.msra.mxu0 %v404
    %424 = vmatprep.subr.bf16.mxu0 0
    %425 = vmatpush1.bf16.msra.mxu0 %v403
    %426 = vmatprep.subr.bf16.mxu0 0
    %427 = vmatpush1.bf16.msra.mxu0 %v402
    %428 = vmatprep.subr.bf16.mxu0 0
    %429 = vmatpush1.bf16.msra.mxu0 %v401
    %430 = vmatprep.subr.bf16.mxu0 0
    %431 = vmatpush1.bf16.msra.mxu0 %v400
    %432 = vmatprep.subr.bf16.mxu0 0
    %433 = vmatpush2.bf16.msra.mxu0 0
    %434 = vmatprep.subr.bf16.mxu0 0
    %435 = vmatpush2.bf16.msra.mxu0 0
    %436 = vmatprep.subr.bf16.mxu0 0
    %437 = vmatpush2.bf16.msra.mxu0 0
    %438 = vmatprep.subr.bf16.mxu0 0
    %439 = vmatpush2.bf16.msra.mxu0 0
    %440 = vmatprep.subr.bf16.mxu0 0
    %441 = vmatpush2.bf16.msra.mxu0 0
    %442 = vmatprep.subr.bf16.mxu0 0
    %443 = vmatpush2.bf16.msra.mxu0 0
    %444 = vmatprep.subr.bf16.mxu0 0
    %445 = vmatpush2.bf16.msra.mxu0 0
    %446 = vmatprep.subr.bf16.mxu0 0
    %447 = vmatpush2.bf16.msra.mxu0 0
    %448 = vmatprep.mubr.bf16.mxu0 0
    %449 = vmatmul.mubr.bf16.gmra.mxu0 %v343
    %v450 = vpop.f32.mrf.mxu0
    %v451 = vadd.f32 %v366, %v450
    %v452 = vpop.f32.mrf.mxu0
    %v453 = vpop.f32.mrf.mxu0
    %v454 = vadd.f32 %v366, %v453
    %v455 = vpop.f32.mrf.mxu0
    %456 = vmatprep.mubr.bf16.mxu0 0
    %457 = vmatmul.mubr.bf16.gmra.mxu0 %v344
    %v458 = vpop.f32.mrf.mxu0
    %v459 = vadd.f32 %v366, %v458
    %v460 = vpop.f32.mrf.mxu0
    %v461 = vpop.f32.mrf.mxu0
    %v462 = vadd.f32 %v366, %v461
    %v463 = vpop.f32.mrf.mxu0
    %464 = vdwg.mxu0
    %vm465 = vcmask 15360
    %466 = vst.msk [vmem:[%s7] sm:$0xff] %vm465, %v451
    %467 = vst.msk [vmem:[%s7 + $0x8] sm:$0xff] %vm465, %v454
    %468 = vst.msk [vmem:[%s7 + $0x10] sm:$0xff] %vm465, %v459
    %469 = vst.msk [vmem:[%s7 + $0x18] sm:$0xff] %vm465, %v462
    // Predicated region
    $region38: #{tpu_custom_call.1} parent=1 // pred_check
      _
    $region39: #{tpu_custom_call.1} parent=1 // pred_check_branch
      %471 = sbr.rel (0) target = $region41
    $region40: #{tpu_custom_call.1} parent=1 // pred_region
      _
    $region41: #{tpu_custom_call.1} parent=1 // pred_fallthru
      _
    // Predicated region
    $region42: #{tpu_custom_call.1} parent=1 // pred_check
      _
    $region43: #{tpu_custom_call.1} parent=1 // pred_check_branch
      %473 = sbr.rel (0) target = $region45
    $region44: #{tpu_custom_call.1} parent=1 // pred_region
      _
    $region45: #{tpu_custom_call.1} parent=1 // pred_fallthru
      _
    %474 = vsyncpa [#allocation3], 1
    %475 = vsyncpa [#allocation5], 1

</llo_original>
